<compile_context>
chip_gen: v7x
topology: tpu7x:2x2x1
jax: 0.10.0
libtpu: 0.0.40
codegen_flags: <defaults>
</compile_context>

<pallas_src>
import functools

import jax
import jax.numpy as jnp
from jax import lax
from jax.experimental import pallas as pl
from jax.experimental.pallas import tpu as pltpu


def _seq_attn_kernel(x_ref, y_ref, maskb_ref, wt_ref, b_ref, out_ref, *,
                     bt, lx, ly):
    """One grid step = `bt` batch elements.

    x_ref:     (bt*lx, H)  compute dtype (f32 or bf16)
    y_ref:     (bt*ly, H)  compute dtype
    maskb_ref: (bt, 1, ly) f32 additive mask (0 or -inf)
    wt_ref:    (H, H)      compute dtype, ALREADY transposed (W^T)
    b_ref:     (1, H)      f32 bias
    out_ref:   (bt*lx, H)  original input dtype
    """
    x = x_ref[...]                      # (bt*lx, H)
    y = y_ref[...]                      # (bt*ly, H)
    wt = wt_ref[...]                    # (H, H) pre-transposed
    b = b_ref[...]                      # (1, H) f32

    # Projections as single big-M matmuls (f32 accumulate), bias + ReLU in f32.
    x_proj = jnp.maximum(
        jnp.dot(x, wt, preferred_element_type=jnp.float32) + b, 0.0)
    y_proj = jnp.maximum(
        jnp.dot(y, wt, preferred_element_type=jnp.float32) + b, 0.0)

    # Cast projections back to the compute dtype so the score matmul also
    # runs on the fast MXU path when bf16 compute is requested.
    xp = x_proj.astype(x.dtype)
    yp = y_proj.astype(y.dtype)

    # Per-batch score / softmax / weighted sum (bt is a small static int ->
    # unrolled python loop of plain 2-D MXU dots; no in-kernel transposes).
    for bi in range(bt):
        xb = xp[bi * lx:(bi + 1) * lx, :]            # (lx, H)
        yb = yp[bi * ly:(bi + 1) * ly, :]            # (ly, H)
        # scores = xb @ yb^T without materializing the transpose.
        s = lax.dot_general(xb, yb, (((1,), (1,)), ((), ())),
                            preferred_element_type=jnp.float32)   # (lx, ly) f32
        s = s + maskb_ref[bi]                        # additive (-inf / 0) mask

        s_max = jnp.max(s, axis=-1, keepdims=True)
        e = jnp.exp(s - s_max)
        denom = jnp.sum(e, axis=-1, keepdims=True)
        alpha = e * pl.reciprocal(denom, approx=True)   # EUP, off the VALU path

        yo = y[bi * ly:(bi + 1) * ly, :]             # original y (not y_proj)
        out_ref[bi * lx:(bi + 1) * lx, :] = jnp.dot(
            alpha.astype(yo.dtype), yo,
            preferred_element_type=jnp.float32).astype(out_ref.dtype)


def _pick_batch_block(B, Lx, Ly, target_rows=256, max_unroll=16):
    """Largest batch block s.t. bt*Lx <= target_rows, bt | B, blocks tile-legal."""
    candidates = []
    for bt in range(1, B + 1):
        if B % bt:
            continue
        full = (bt == B)
        if not (full or (bt * Lx) % 8 == 0):
            continue
        if not (full or (bt * Ly) % 8 == 0):
            continue
        if bt <= max_unroll and bt * Lx <= max(Lx, target_rows):
            candidates.append(bt)
    if candidates:
        return max(candidates)
    return B   # full-batch block always satisfies the "full dim" tiling rule


def seq_attn_match(x, y, y_mask, weight, bias, *, compute_dtype=None,
                   target_rows=256):
    """x:(B,Lx,H) y:(B,Ly,H) y_mask:(B,Ly) bool  weight:(H,H) bias:(H,).

    compute_dtype: dtype for the matmul operands (e.g. jnp.bfloat16 for the
    fast MXU path); accumulation / softmax always stay in f32.
    """
    B, Lx, H = x.shape
    _, Ly, _ = y.shape
    cdt = compute_dtype if compute_dtype is not None else x.dtype
    bt = _pick_batch_block(B, Lx, Ly, target_rows)

    # Trace-time (XLA-side) prep: flatten batch*seq, pre-transpose the weight,
    # build the additive -inf mask.  All effectively free vs. doing it per step.
    x2 = x.reshape(B * Lx, H).astype(cdt)
    y2 = y.reshape(B * Ly, H).astype(cdt)
    wt = weight.T.astype(cdt)                                   # (H, H) == W^T
    b2 = bias.reshape(1, H).astype(jnp.float32)
    mask_bias = jnp.where(y_mask, -jnp.inf, 0.0).astype(jnp.float32)
    mask_bias = mask_bias.reshape(B, 1, Ly)

    # VMEM budget: double-buffered in/out tiles + weight/mask/bias + f32
    # intermediates; cap at 64 MiB so it also fits v7x's physical VMEM.
    c_item = jnp.dtype(cdt).itemsize
    o_item = jnp.dtype(x.dtype).itemsize
    work = 2 * (bt * Lx * H + bt * Ly * H) * c_item          # x/y tiles (2-buf)
    work += 2 * bt * Lx * H * o_item                         # out tile (2-buf)
    work += 2 * (H * H * c_item + (bt * Ly + H) * 4)         # W^T, mask, bias
    work += (bt * (Lx + Ly) * H + Lx * Ly) * 4               # xp/yp/scores (f32)
    vmem_limit = int(min(max(2 * work, 32 * 1024 * 1024), 64 * 1024 * 1024))

    kernel = functools.partial(_seq_attn_kernel, bt=bt, lx=Lx, ly=Ly)

    out2 = pl.pallas_call(
        kernel,
        out_shape=jax.ShapeDtypeStruct((B * Lx, H), x.dtype),
        grid_spec=pltpu.PrefetchScalarGridSpec(
            num_scalar_prefetch=0,
            grid=(B // bt,),
            in_specs=[
                pl.BlockSpec((bt * Lx, H), lambda i: (i, 0)),
                pl.BlockSpec((bt * Ly, H), lambda i: (i, 0)),
                pl.BlockSpec((bt, 1, Ly), lambda i: (i, 0, 0)),
                pl.BlockSpec((H, H), lambda i: (0, 0)),
                pl.BlockSpec((1, H), lambda i: (0, 0)),
            ],
            out_specs=pl.BlockSpec((bt * Lx, H), lambda i: (i, 0)),
        ),
        compiler_params=pltpu.CompilerParams(
            dimension_semantics=("parallel",),
            vmem_limit_bytes=vmem_limit,
        ),
    )(x2, y2, mask_bias, wt, b2)

    return out2.reshape(B, Lx, H)


def _reference(x, y, y_mask, weight, bias):
    """Plain-JAX f32 reference mirroring the PyTorch forward."""
    xp = jax.nn.relu(x @ weight.T + bias)
    yp = jax.nn.relu(y @ weight.T + bias)
    scores = jnp.einsum("bxh,byh->bxy", xp, yp)
    scores = jnp.where(y_mask[:, None, :], -jnp.inf, scores)
    alpha = jax.nn.softmax(scores, axis=-1)
    return jnp.einsum("bxy,byh->bxh", alpha, y)


if __name__ == "__main__":
    B, Lx, Ly, H = 2, 8, 8, 32

    key = jax.random.PRNGKey(0)
    kx, ky, kw, kb = jax.random.split(key, 4)

    x = jax.random.normal(kx, (B, Lx, H), dtype=jnp.float32)
    y = jax.random.normal(ky, (B, Ly, H), dtype=jnp.float32)
    weight = jax.random.normal(kw, (H, H), dtype=jnp.float32) * 0.1
    bias = jax.random.normal(kb, (H,), dtype=jnp.float32) * 0.1
    # Last two positions of every y sequence are padding (no fully masked rows).
    y_mask = jnp.zeros((B, Ly), dtype=bool).at[:, Ly - 2:].set(True)

    ref = _reference(x, y, y_mask, weight, bias)

    # f32 path: tight check (only slack is the approx EUP reciprocal, which is
    # a pure relative scaling of each output row -> covered by rtol).
    out_f32 = jax.block_until_ready(seq_attn_match(x, y, y_mask, weight, bias))
    assert out_f32.shape == (B, Lx, H)
    assert jnp.allclose(out_f32, ref, atol=1e-4, rtol=5e-3)

    # bf16 fast-MXU path: looser check (bf16 rounding of matmul operands).
    out_bf16 = jax.block_until_ready(
        seq_attn_match(x, y, y_mask, weight, bias, compute_dtype=jnp.bfloat16))
    assert out_bf16.shape == (B, Lx, H)
    assert bool(jnp.all(jnp.isfinite(out_bf16)))
    assert jnp.allclose(out_bf16, ref, atol=1e-1, rtol=2e-2)

    print("KERNEL_OK")
</pallas_src>

<mosaic_0001>
module attributes {stable_mosaic.version = 11 : i64} {
  func.func @_seq_attn_kernel(%arg0: i32, %arg1: memref<16x32xf32, #tpu.memory_space<vmem>>, %arg2: memref<16x32xf32, #tpu.memory_space<vmem>>, %arg3: memref<2x1x8xf32, #tpu.memory_space<vmem>>, %arg4: memref<32x32xf32, #tpu.memory_space<vmem>>, %arg5: memref<1x32xf32, #tpu.memory_space<vmem>>, %arg6: memref<16x32xf32, #tpu.memory_space<vmem>>) attributes {dimension_semantics = [#tpu.dimension_semantics<parallel>], iteration_bounds = array<i64: 1>, scalar_prefetch = 0 : i64, scratch_operands = 0 : i64, tpu.core_type = #tpu.core_type<tc>, window_params = [{transform_indices = @transform_0, window_bounds = array<i64: 16, 32>}, {transform_indices = @transform_1, window_bounds = array<i64: 16, 32>}, {transform_indices = @transform_2, window_bounds = array<i64: 2, 1, 8>}, {pipeline_mode = #tpu.pipeline_mode<synchronous>, transform_indices = @transform_3, window_bounds = array<i64: 32, 32>}, {pipeline_mode = #tpu.pipeline_mode<synchronous>, transform_indices = @transform_4, window_bounds = array<i64: 1, 32>}, {transform_indices = @transform_5, window_bounds = array<i64: 16, 32>}]} {
    %c0 = arith.constant 0 : index
    %c0_0 = arith.constant 0 : index
    %0 = vector.load %arg1[%c0, %c0_0] : memref<16x32xf32, #tpu.memory_space<vmem>>, vector<16x32xf32>
    %c0_1 = arith.constant 0 : index
    %c0_2 = arith.constant 0 : index
    %1 = vector.load %arg2[%c0_1, %c0_2] : memref<16x32xf32, #tpu.memory_space<vmem>>, vector<16x32xf32>
    %c0_3 = arith.constant 0 : index
    %c0_4 = arith.constant 0 : index
    %2 = vector.load %arg4[%c0_3, %c0_4] : memref<32x32xf32, #tpu.memory_space<vmem>>, vector<32x32xf32>
    %c0_5 = arith.constant 0 : index
    %c0_6 = arith.constant 0 : index
    %3 = vector.load %arg5[%c0_5, %c0_6] : memref<1x32xf32, #tpu.memory_space<vmem>>, vector<1x32xf32>
    %cst = arith.constant dense<0.000000e+00> : vector<16x32xf32>
    %4 = tpu.matmul %0, %2, %cst {dimension_numbers = #tpu.dot_dimension_numbers<[1], [0], [0], [1], [0, 0, 1, 1], [], []>} : vector<16x32xf32>, vector<32x32xf32>, vector<16x32xf32> -> vector<16x32xf32>
    %5 = vector.broadcast %3 : vector<1x32xf32> to vector<16x32xf32>
    %6 = arith.addf %4, %5 : vector<16x32xf32>
    %cst_7 = arith.constant 0.000000e+00 : f32
    %7 = vector.broadcast %cst_7 : f32 to vector<16x32xf32>
    %8 = arith.maximumf %6, %7 : vector<16x32xf32>
    %cst_8 = arith.constant dense<0.000000e+00> : vector<16x32xf32>
    %9 = tpu.matmul %1, %2, %cst_8 {dimension_numbers = #tpu.dot_dimension_numbers<[1], [0], [0], [1], [0, 0, 1, 1], [], []>} : vector<16x32xf32>, vector<32x32xf32>, vector<16x32xf32> -> vector<16x32xf32>
    %10 = vector.broadcast %3 : vector<1x32xf32> to vector<16x32xf32>
    %11 = arith.addf %9, %10 : vector<16x32xf32>
    %cst_9 = arith.constant 0.000000e+00 : f32
    %12 = vector.broadcast %cst_9 : f32 to vector<16x32xf32>
    %13 = arith.maximumf %11, %12 : vector<16x32xf32>
    %14 = vector.extract_strided_slice %8 {offsets = [0, 0], sizes = [8, 32], strides = [1, 1]} : vector<16x32xf32> to vector<8x32xf32>
    %15 = vector.extract_strided_slice %13 {offsets = [0, 0], sizes = [8, 32], strides = [1, 1]} : vector<16x32xf32> to vector<8x32xf32>
    %cst_10 = arith.constant dense<0.000000e+00> : vector<8x8xf32>
    %16 = tpu.matmul %14, %15, %cst_10 {dimension_numbers = #tpu.dot_dimension_numbers<[1], [1], [0], [0], [0, 0, 1, 0], [], []>} : vector<8x32xf32>, vector<8x32xf32>, vector<8x8xf32> -> vector<8x8xf32>
    %c0_11 = arith.constant 0 : index
    %c0_12 = arith.constant 0 : index
    %c0_13 = arith.constant 0 : index
    %17 = vector.load %arg3[%c0_11, %c0_12, %c0_13] : memref<2x1x8xf32, #tpu.memory_space<vmem>>, vector<1x1x8xf32>
    %18 = vector.shape_cast %17 : vector<1x1x8xf32> to vector<1x8xf32>
    %19 = vector.broadcast %18 : vector<1x8xf32> to vector<8x8xf32>
    %20 = arith.addf %16, %19 : vector<8x8xf32>
    %cst_14 = arith.constant dense<0xFF800000> : vector<8xf32>
    %21 = vector.multi_reduction <maximumf>, %20, %cst_14 [1] : vector<8x8xf32> to vector<8xf32>
    %22 = vector.shape_cast %21 : vector<8xf32> to vector<8x1xf32>
    %23 = vector.broadcast %22 : vector<8x1xf32> to vector<8x8xf32>
    %24 = arith.subf %20, %23 : vector<8x8xf32>
    %25 = math.exp %24 : vector<8x8xf32>
    %cst_15 = arith.constant dense<0.000000e+00> : vector<8xf32>
    %26 = vector.multi_reduction <add>, %25, %cst_15 [1] : vector<8x8xf32> to vector<8xf32>
    %27 = vector.shape_cast %26 : vector<8xf32> to vector<8x1xf32>
    %28 = tpu.reciprocal %27 {approx = true} : vector<8x1xf32> -> vector<8x1xf32>
    %29 = vector.broadcast %28 : vector<8x1xf32> to vector<8x8xf32>
    %30 = arith.mulf %25, %29 : vector<8x8xf32>
    %31 = vector.extract_strided_slice %1 {offsets = [0, 0], sizes = [8, 32], strides = [1, 1]} : vector<16x32xf32> to vector<8x32xf32>
    %cst_16 = arith.constant dense<0.000000e+00> : vector<8x32xf32>
    %32 = tpu.matmul %30, %31, %cst_16 {dimension_numbers = #tpu.dot_dimension_numbers<[1], [0], [0], [1], [0, 0, 1, 1], [], []>} : vector<8x8xf32>, vector<8x32xf32>, vector<8x32xf32> -> vector<8x32xf32>
    %c0_17 = arith.constant 0 : index
    %c0_18 = arith.constant 0 : index
    %33 = vector.load %arg6[%c0_17, %c0_18] : memref<16x32xf32, #tpu.memory_space<vmem>>, vector<8x32xf32>
    tpu.vector_store %arg6[%c0_17, %c0_18], %32 {strides = array<i32>} : memref<16x32xf32, #tpu.memory_space<vmem>>, vector<8x32xf32>,
    %34 = vector.extract_strided_slice %8 {offsets = [8, 0], sizes = [8, 32], strides = [1, 1]} : vector<16x32xf32> to vector<8x32xf32>
    %35 = vector.extract_strided_slice %13 {offsets = [8, 0], sizes = [8, 32], strides = [1, 1]} : vector<16x32xf32> to vector<8x32xf32>
    %cst_19 = arith.constant dense<0.000000e+00> : vector<8x8xf32>
    %36 = tpu.matmul %34, %35, %cst_19 {dimension_numbers = #tpu.dot_dimension_numbers<[1], [1], [0], [0], [0, 0, 1, 0], [], []>} : vector<8x32xf32>, vector<8x32xf32>, vector<8x8xf32> -> vector<8x8xf32>
    %c1 = arith.constant 1 : index
    %c0_20 = arith.constant 0 : index
    %c0_21 = arith.constant 0 : index
    %37 = vector.load %arg3[%c1, %c0_20, %c0_21] : memref<2x1x8xf32, #tpu.memory_space<vmem>>, vector<1x1x8xf32>
    %38 = vector.shape_cast %37 : vector<1x1x8xf32> to vector<1x8xf32>
    %39 = vector.broadcast %38 : vector<1x8xf32> to vector<8x8xf32>
    %40 = arith.addf %36, %39 : vector<8x8xf32>
    %cst_22 = arith.constant dense<0xFF800000> : vector<8xf32>
    %41 = vector.multi_reduction <maximumf>, %40, %cst_22 [1] : vector<8x8xf32> to vector<8xf32>
    %42 = vector.shape_cast %41 : vector<8xf32> to vector<8x1xf32>
    %43 = vector.broadcast %42 : vector<8x1xf32> to vector<8x8xf32>
    %44 = arith.subf %40, %43 : vector<8x8xf32>
    %45 = math.exp %44 : vector<8x8xf32>
    %cst_23 = arith.constant dense<0.000000e+00> : vector<8xf32>
    %46 = vector.multi_reduction <add>, %45, %cst_23 [1] : vector<8x8xf32> to vector<8xf32>
    %47 = vector.shape_cast %46 : vector<8xf32> to vector<8x1xf32>
    %48 = tpu.reciprocal %47 {approx = true} : vector<8x1xf32> -> vector<8x1xf32>
    %49 = vector.broadcast %48 : vector<8x1xf32> to vector<8x8xf32>
    %50 = arith.mulf %45, %49 : vector<8x8xf32>
    %51 = vector.extract_strided_slice %1 {offsets = [8, 0], sizes = [8, 32], strides = [1, 1]} : vector<16x32xf32> to vector<8x32xf32>
    %cst_24 = arith.constant dense<0.000000e+00> : vector<8x32xf32>
    %52 = tpu.matmul %50, %51, %cst_24 {dimension_numbers = #tpu.dot_dimension_numbers<[1], [0], [0], [1], [0, 0, 1, 1], [], []>} : vector<8x8xf32>, vector<8x32xf32>, vector<8x32xf32> -> vector<8x32xf32>
    %c8 = arith.constant 8 : index
    %c0_25 = arith.constant 0 : index
    %53 = vector.load %arg6[%c8, %c0_25] : memref<16x32xf32, #tpu.memory_space<vmem>>, vector<8x32xf32>
    tpu.vector_store %arg6[%c8, %c0_25], %52 {strides = array<i32>} : memref<16x32xf32, #tpu.memory_space<vmem>>, vector<8x32xf32>,
    return
  }
  func.func @transform_0(%arg0: i32) -> (i32, i32) {
    %c0_i32 = arith.constant 0 : i32
    %c0_i32_0 = arith.constant 0 : i32
    return %arg0, %c0_i32 : i32, i32
  }
  func.func @transform_1(%arg0: i32) -> (i32, i32) {
    %c0_i32 = arith.constant 0 : i32
    %c0_i32_0 = arith.constant 0 : i32
    return %arg0, %c0_i32 : i32, i32
  }
  func.func @transform_2(%arg0: i32) -> (i32, i32, i32) {
    %c0_i32 = arith.constant 0 : i32
    %c0_i32_0 = arith.constant 0 : i32
    %c0_i32_1 = arith.constant 0 : i32
    return %arg0, %c0_i32, %c0_i32_0 : i32, i32, i32
  }
  func.func @transform_3(%arg0: i32) -> (i32, i32) {
    %c0_i32 = arith.constant 0 : i32
    %c0_i32_0 = arith.constant 0 : i32
    %c0_i32_1 = arith.constant 0 : i32
    return %c0_i32, %c0_i32_0 : i32, i32
  }
  func.func @transform_4(%arg0: i32) -> (i32, i32) {
    %c0_i32 = arith.constant 0 : i32
    %c0_i32_0 = arith.constant 0 : i32
    %c0_i32_1 = arith.constant 0 : i32
    return %c0_i32, %c0_i32_0 : i32, i32
  }
  func.func @transform_5(%arg0: i32) -> (i32, i32) {
    %c0_i32 = arith.constant 0 : i32
    %c0_i32_0 = arith.constant 0 : i32
    return %arg0, %c0_i32 : i32, i32
  }
}

</mosaic_0001>

<llo_original>
// kernel: tpu_custom_call.1
$region0: #{tpu_custom_call.1}
  #allocation0 [shape = 'u32[]', space=smem, size = 0x4, offset = 0x4, fixed_abs, tag = 'smem constant byte address 0x4 - core index']
  #allocation1 [shape = 'u32[144,128]{1,0:T(1,128)}', space=vmem, size = 0x12000, scoped, tag = 'internal scratch']
  %s0 = inlined_call_operand.hbm [shape: f32[16,32], index: 0, kind: input, shape index: {}]
  %s1 = inlined_call_operand.hbm [shape: f32[16,32], index: 1, kind: input, shape index: {}]
  %s2 = inlined_call_operand.vmem [shape: f32[2,1,8], index: 2, kind: input, shape index: {}]
  %s3 = inlined_call_operand.hbm [shape: f32[32,32], index: 3, kind: input, shape index: {}]
  %s4 = inlined_call_operand.vmem [shape: f32[1,32], index: 4, kind: input, shape index: {}]
  %s5 = inlined_call_operand.hbm [shape: f32[16,32], index: 5, kind: output, shape index: {}]
  %s6 = sld [smem:[#allocation0]]
  $region42: #{tpu_custom_call.1} parent=0
    _
  %s8 = ssub.s32 1, %s6
  %s9 = scalar_select 0, %s8, %s6
  $region1: #{tpu_custom_call.1} parent=0
    #allocation2 [shape = 'u8[8192]{0}', space=vmem, size = 0x2000, scoped, tag = 'input window, operand 0, single buffered']
    #allocation3 [shape = 's32[1]{0}', space=sflag, size = 0x4, scoped, tag = 'scoped memory for tpu_custom_call.1']
    #allocation4 [shape = 's32[1]{0}', space=sflag, size = 0x4, scoped, tag = 'scoped memory for tpu_custom_call.1']
    #allocation5 [shape = 'u8[8192]{0}', space=vmem, size = 0x2000, scoped, tag = 'input window, operand 1, single buffered']
    #allocation6 [shape = 's32[1]{0}', space=sflag, size = 0x4, scoped, tag = 'scoped memory for tpu_custom_call.1']
    #allocation7 [shape = 'u8[16384]{0}', space=vmem, size = 0x4000, scoped, tag = 'input window, operand 3, single buffered']
    #allocation8 [shape = 'u8[8192]{0}', space=vmem, size = 0x2000, scoped, tag = 'output window, operand 0, single buffered']
    %10 = vsyncpa [#allocation3], 0
    %11 = vsyncpa [#allocation6], 0
    %12 = vsyncpa [#allocation4], 0
    // Predicated region
    $region2: #{tpu_custom_call.1} parent=1 // pred_check
      _
    $region3: #{tpu_custom_call.1} parent=1 // pred_check_branch
      %14 = sbr.rel (0) target = $region5
    $region4: #{tpu_custom_call.1} parent=1 // pred_region
      %s16 = ssub.s32 256, 256
      %17 = vsyncadd [#allocation3], %s16
      %s18 = sshll.u32 [#allocation2], 4
      %s19 = int_to_ptr.vmem [resolvable:$true] %s18
      %24 = dma.hbm_to_vmem [thread:$0]  %s0, 256, %s19, [#allocation3], 128, 128, 8
    $region5: #{tpu_custom_call.1} parent=1 // pred_fallthru
      _
    // Predicated region
    $region6: #{tpu_custom_call.1} parent=1 // pred_check
      _
    $region7: #{tpu_custom_call.1} parent=1 // pred_check_branch
      %26 = sbr.rel (0) target = $region9
    $region8: #{tpu_custom_call.1} parent=1 // pred_region
      %s28 = ssub.s32 256, 256
      %29 = vsyncadd [#allocation6], %s28
      %s30 = sshll.u32 [#allocation5], 4
      %s31 = int_to_ptr.vmem [resolvable:$true] %s30
      %36 = dma.hbm_to_vmem [thread:$0]  %s1, 256, %s31, [#allocation6], 128, 128, 8
    $region9: #{tpu_custom_call.1} parent=1 // pred_fallthru
      _
    // Predicated region
    $region10: #{tpu_custom_call.1} parent=1 // pred_check
      _
    $region11: #{tpu_custom_call.1} parent=1 // pred_check_branch
      %38 = sbr.rel (0) target = $region13
    $region12: #{tpu_custom_call.1} parent=1 // pred_region
      _
    $region13: #{tpu_custom_call.1} parent=1 // pred_fallthru
      _
    // Predicated region
    $region14: #{tpu_custom_call.1} parent=1 // pred_check
      _
    $region15: #{tpu_custom_call.1} parent=1 // pred_check_branch
      %40 = sbr.rel (0) target = $region17
    $region16: #{tpu_custom_call.1} parent=1 // pred_region
      %s42 = ssub.s32 512, 512
      %43 = vsyncadd [#allocation6], %s42
      %s44 = sshll.u32 [#allocation7], 4
      %s45 = int_to_ptr.vmem [resolvable:$true] %s44
      %50 = dma.hbm_to_vmem [thread:$0]  %s3, 512, %s45, [#allocation6], 128, 128, 8
    $region17: #{tpu_custom_call.1} parent=1 // pred_fallthru
      _
    // Predicated region
    $region18: #{tpu_custom_call.1} parent=1 // pred_check
      _
    $region19: #{tpu_custom_call.1} parent=1 // pred_check_branch
      %52 = sbr.rel (0) target = $region21
    $region20: #{tpu_custom_call.1} parent=1 // pred_region
      _
    $region21: #{tpu_custom_call.1} parent=1 // pred_fallthru
      _
    // Predicated region
    $region22: #{tpu_custom_call.1} parent=1 // pred_check
      _
    $region23: #{tpu_custom_call.1} parent=1 // pred_check_branch
      %54 = sbr.rel (0) target = $region25
    $region24: #{tpu_custom_call.1} parent=1 // pred_region
      %55 = dma.done [#allocation3], 256
    $region25: #{tpu_custom_call.1} parent=1 // pred_fallthru
      _
    // Predicated region
    $region26: #{tpu_custom_call.1} parent=1 // pred_check
      _
    $region27: #{tpu_custom_call.1} parent=1 // pred_check_branch
      %57 = sbr.rel (0) target = $region29
    $region28: #{tpu_custom_call.1} parent=1 // pred_region
      %58 = dma.done [#allocation6], 256
    $region29: #{tpu_custom_call.1} parent=1 // pred_fallthru
      _
    // Predicated region
    $region30: #{tpu_custom_call.1} parent=1 // pred_check
      _
    $region31: #{tpu_custom_call.1} parent=1 // pred_check_branch
      %60 = sbr.rel (0) target = $region33
    $region32: #{tpu_custom_call.1} parent=1 // pred_region
      %61 = dma.done [#allocation6], 512
    $region33: #{tpu_custom_call.1} parent=1 // pred_fallthru
      _
    %v62 = vld [vmem:[#allocation2] sm:$0xff]
    %v63 = vld [vmem:[#allocation2 + $0x8] sm:$0xff]
    %v64 = vld [vmem:[#allocation5] sm:$0xff]
    %v65 = vld [vmem:[#allocation5 + $0x8] sm:$0xff]
    %v66 = vld [vmem:[#allocation7] sm:$0xff]
    %v67 = vld [vmem:[#allocation7 + $0x8] sm:$0xff]
    %v68 = vld [vmem:[#allocation7 + $0x10] sm:$0xff]
    %v69 = vld [vmem:[#allocation7 + $0x18] sm:$0xff]
    %v70 = vld [vmem:[%s4] sm:$0x1]
    %v72 = vlaneseq
    %v73 = vshrl.u32 %v72, 7
    %v74 = vsub.s32 0, %v73
    %v75 = vrot.slane %v70, %v74
    %vm77 = vcmask 261120
    %v79 = vsel %vm77, %v62, 0
    %v82 = vsel %vm77, %v63, 0
    %84 = vmatprep.subr.mxu0 0.0
    %85 = vmatpush1.msra.mxu0 %v66
    %86 = vmatprep.subr.mxu0 0.0
    %87 = vmatpush1.msra.mxu0 %v67
    %88 = vmatprep.subr.mxu0 0.0
    %89 = vmatpush1.msra.mxu0 %v68
    %90 = vmatprep.subr.mxu0 0.0
    %91 = vmatpush1.msra.mxu0 %v69
    %92 = vmatprep.subr.mxu0 0.0
    %93 = vmatpush1.msra.mxu0 0.0
    %94 = vmatprep.subr.mxu0 0.0
    %95 = vmatpush1.msra.mxu0 0.0
    %96 = vmatprep.subr.mxu0 0.0
    %97 = vmatpush1.msra.mxu0 0.0
    %98 = vmatprep.subr.mxu0 0.0
    %99 = vmatpush1.msra.mxu0 0.0
    %100 = vmatprep.subr.mxu0 0.0
    %101 = vmatpush1.msra.mxu0 0.0
    %102 = vmatprep.subr.mxu0 0.0
    %103 = vmatpush1.msra.mxu0 0.0
    %104 = vmatprep.subr.mxu0 0.0
    %105 = vmatpush1.msra.mxu0 0.0
    %106 = vmatprep.subr.mxu0 0.0
    %107 = vmatpush1.msra.mxu0 0.0
    %108 = vmatprep.subr.mxu0 0.0
    %109 = vmatpush1.msra.mxu0 0.0
    %110 = vmatprep.subr.mxu0 0.0
    %111 = vmatpush1.msra.mxu0 0.0
    %112 = vmatprep.subr.mxu0 0.0
    %113 = vmatpush1.msra.mxu0 0.0
    %114 = vmatprep.subr.mxu0 0.0
    %115 = vmatpush1.msra.mxu0 0.0
    %116 = vmatprep.subr.mxu0 0.0
    %117 = vmatpush1.msra.mxu0 0.0
    %118 = vmatprep.subr.mxu0 0.0
    %119 = vmatpush1.msra.mxu0 0.0
    %120 = vmatprep.subr.mxu0 0.0
    %121 = vmatpush1.msra.mxu0 0.0
    %122 = vmatprep.subr.mxu0 0.0
    %123 = vmatpush1.msra.mxu0 0.0
    %124 = vmatprep.subr.mxu0 0.0
    %125 = vmatpush1.msra.mxu0 0.0
    %126 = vmatprep.subr.mxu0 0.0
    %127 = vmatpush1.msra.mxu0 0.0
    %128 = vmatprep.subr.mxu0 0.0
    %129 = vmatpush1.msra.mxu0 0.0
    %130 = vmatprep.subr.mxu0 0.0
    %131 = vmatpush1.msra.mxu0 0.0
    %132 = vmatprep.subr.mxu0 0.0
    %133 = vmatpush1.msra.mxu0 0.0
    %134 = vmatprep.subr.mxu0 0.0
    %135 = vmatpush1.msra.mxu0 0.0
    %136 = vmatprep.subr.mxu0 0.0
    %137 = vmatpush1.msra.mxu0 0.0
    %138 = vmatprep.subr.mxu0 0.0
    %139 = vmatpush1.msra.mxu0 0.0
    %140 = vmatprep.subr.mxu0 0.0
    %141 = vmatpush1.msra.mxu0 0.0
    %142 = vmatprep.subr.mxu0 0.0
    %143 = vmatpush1.msra.mxu0 0.0
    %144 = vmatprep.subr.mxu0 0.0
    %145 = vmatpush1.msra.mxu0 0.0
    %146 = vmatprep.subr.mxu0 0.0
    %147 = vmatpush1.msra.mxu0 0.0
    %148 = vmatprep.mubr.f32.mxu0 0.0
    %149 = vmatmul.mubr.f32.gmra.mrb[0].mxu0 %v79
    %v150 = vpop.f32.mrb[0].mxu0
    %v151 = vadd.f32 %v75, %v150
    %v152 = vpop.f32.mrb[0].mxu0
    %153 = vmatprep.mubr.f32.mxu0 0.0
    %154 = vmatmul.mubr.f32.gmra.mrb[0].mxu0 %v82
    %v155 = vpop.f32.mrb[0].mxu0
    %v156 = vadd.f32 %v75, %v155
    %v157 = vpop.f32.mrb[0].mxu0
    %158 = vdwg.mxu0
    %v159 = vmax.f32 %v151, 0.0
    %v160 = vmax.f32 %v156, 0.0
    %v162 = vsel %vm77, %v64, 0
    %v165 = vsel %vm77, %v65, 0
    %167 = vmatprep.subr.mxu0 0.0
    %168 = vmatpush1.msra.mxu0 %v66
    %169 = vmatprep.subr.mxu0 0.0
    %170 = vmatpush1.msra.mxu0 %v67
    %171 = vmatprep.subr.mxu0 0.0
    %172 = vmatpush1.msra.mxu0 %v68
    %173 = vmatprep.subr.mxu0 0.0
    %174 = vmatpush1.msra.mxu0 %v69
    %175 = vmatprep.subr.mxu0 0.0
    %176 = vmatpush1.msra.mxu0 0.0
    %177 = vmatprep.subr.mxu0 0.0
    %178 = vmatpush1.msra.mxu0 0.0
    %179 = vmatprep.subr.mxu0 0.0
    %180 = vmatpush1.msra.mxu0 0.0
    %181 = vmatprep.subr.mxu0 0.0
    %182 = vmatpush1.msra.mxu0 0.0
    %183 = vmatprep.subr.mxu0 0.0
    %184 = vmatpush1.msra.mxu0 0.0
    %185 = vmatprep.subr.mxu0 0.0
    %186 = vmatpush1.msra.mxu0 0.0
    %187 = vmatprep.subr.mxu0 0.0
    %188 = vmatpush1.msra.mxu0 0.0
    %189 = vmatprep.subr.mxu0 0.0
    %190 = vmatpush1.msra.mxu0 0.0
    %191 = vmatprep.subr.mxu0 0.0
    %192 = vmatpush1.msra.mxu0 0.0
    %193 = vmatprep.subr.mxu0 0.0
    %194 = vmatpush1.msra.mxu0 0.0
    %195 = vmatprep.subr.mxu0 0.0
    %196 = vmatpush1.msra.mxu0 0.0
    %197 = vmatprep.subr.mxu0 0.0
    %198 = vmatpush1.msra.mxu0 0.0
    %199 = vmatprep.subr.mxu0 0.0
    %200 = vmatpush1.msra.mxu0 0.0
    %201 = vmatprep.subr.mxu0 0.0
    %202 = vmatpush1.msra.mxu0 0.0
    %203 = vmatprep.subr.mxu0 0.0
    %204 = vmatpush1.msra.mxu0 0.0
    %205 = vmatprep.subr.mxu0 0.0
    %206 = vmatpush1.msra.mxu0 0.0
    %207 = vmatprep.subr.mxu0 0.0
    %208 = vmatpush1.msra.mxu0 0.0
    %209 = vmatprep.subr.mxu0 0.0
    %210 = vmatpush1.msra.mxu0 0.0
    %211 = vmatprep.subr.mxu0 0.0
    %212 = vmatpush1.msra.mxu0 0.0
    %213 = vmatprep.subr.mxu0 0.0
    %214 = vmatpush1.msra.mxu0 0.0
    %215 = vmatprep.subr.mxu0 0.0
    %216 = vmatpush1.msra.mxu0 0.0
    %217 = vmatprep.subr.mxu0 0.0
    %218 = vmatpush1.msra.mxu0 0.0
    %219 = vmatprep.subr.mxu0 0.0
    %220 = vmatpush1.msra.mxu0 0.0
    %221 = vmatprep.subr.mxu0 0.0
    %222 = vmatpush1.msra.mxu0 0.0
    %223 = vmatprep.subr.mxu0 0.0
    %224 = vmatpush1.msra.mxu0 0.0
    %225 = vmatprep.subr.mxu0 0.0
    %226 = vmatpush1.msra.mxu0 0.0
    %227 = vmatprep.subr.mxu0 0.0
    %228 = vmatpush1.msra.mxu0 0.0
    %229 = vmatprep.subr.mxu0 0.0
    %230 = vmatpush1.msra.mxu0 0.0
    %231 = vmatprep.mubr.f32.mxu0 0.0
    %232 = vmatmul.mubr.f32.gmra.mrb[0].mxu0 %v162
    %v233 = vpop.f32.mrb[0].mxu0
    %v234 = vadd.f32 %v75, %v233
    %v235 = vpop.f32.mrb[0].mxu0
    %236 = vmatprep.mubr.f32.mxu0 0.0
    %237 = vmatmul.mubr.f32.gmra.mrb[0].mxu0 %v165
    %v238 = vpop.f32.mrb[0].mxu0
    %v239 = vadd.f32 %v75, %v238
    %v240 = vpop.f32.mrb[0].mxu0
    %241 = vdwg.mxu0
    %v242 = vmax.f32 %v234, 0.0
    %v243 = vmax.f32 %v239, 0.0
    %v244 = vld [vmem:[%s2] sm:$0x1]
    %v246 = vlaneseq
    %v247 = vshrl.u32 %v246, 7
    %v248 = vsub.s32 0, %v247
    %v249 = vrot.slane %v244, %v248
    %v252 = vsel %vm77, %v159, 0
    %v255 = vsel %vm77, %v242, 0
    %257 = vmatprep.subr.mxu0 0.0
    %258 = vmatpush1.xpose.msra.mxu0 %v255
    %259 = vmatprep.subr.mxu0 0.0
    %260 = vmatpush1.xpose.msra.mxu0 0.0
    %261 = vmatprep.subr.mxu0 0.0
    %262 = vmatpush1.xpose.msra.mxu0 0.0
    %263 = vmatprep.subr.mxu0 0.0
    %264 = vmatpush1.xpose.msra.mxu0 0.0
    %265 = vmatprep.subr.mxu0 0.0
    %266 = vmatpush1.xpose.msra.mxu0 0.0
    %267 = vmatprep.subr.mxu0 0.0
    %268 = vmatpush1.xpose.msra.mxu0 0.0
    %269 = vmatprep.subr.mxu0 0.0
    %270 = vmatpush1.xpose.msra.mxu0 0.0
    %271 = vmatprep.subr.mxu0 0.0
    %272 = vmatpush1.xpose.msra.mxu0 0.0
    %273 = vmatprep.subr.mxu0 0.0
    %274 = vmatpush1.xpose.msra.mxu0 0.0
    %275 = vmatprep.subr.mxu0 0.0
    %276 = vmatpush1.xpose.msra.mxu0 0.0
    %277 = vmatprep.subr.mxu0 0.0
    %278 = vmatpush1.xpose.msra.mxu0 0.0
    %279 = vmatprep.subr.mxu0 0.0
    %280 = vmatpush1.xpose.msra.mxu0 0.0
    %281 = vmatprep.subr.mxu0 0.0
    %282 = vmatpush1.xpose.msra.mxu0 0.0
    %283 = vmatprep.subr.mxu0 0.0
    %284 = vmatpush1.xpose.msra.mxu0 0.0
    %285 = vmatprep.subr.mxu0 0.0
    %286 = vmatpush1.xpose.msra.mxu0 0.0
    %287 = vmatprep.subr.mxu0 0.0
    %288 = vmatpush1.xpose.msra.mxu0 0.0
    %289 = vmatprep.subr.mxu0 0.0
    %290 = vmatpush1.xpose.msra.mxu0 0.0
    %291 = vmatprep.subr.mxu0 0.0
    %292 = vmatpush1.xpose.msra.mxu0 0.0
    %293 = vmatprep.subr.mxu0 0.0
    %294 = vmatpush1.xpose.msra.mxu0 0.0
    %295 = vmatprep.subr.mxu0 0.0
    %296 = vmatpush1.xpose.msra.mxu0 0.0
    %297 = vmatprep.subr.mxu0 0.0
    %298 = vmatpush1.xpose.msra.mxu0 0.0
    %299 = vmatprep.subr.mxu0 0.0
    %300 = vmatpush1.xpose.msra.mxu0 0.0
    %301 = vmatprep.subr.mxu0 0.0
    %302 = vmatpush1.xpose.msra.mxu0 0.0
    %303 = vmatprep.subr.mxu0 0.0
    %304 = vmatpush1.xpose.msra.mxu0 0.0
    %305 = vmatprep.subr.mxu0 0.0
    %306 = vmatpush1.xpose.msra.mxu0 0.0
    %307 = vmatprep.subr.mxu0 0.0
    %308 = vmatpush1.xpose.msra.mxu0 0.0
    %309 = vmatprep.subr.mxu0 0.0
    %310 = vmatpush1.xpose.msra.mxu0 0.0
    %311 = vmatprep.subr.mxu0 0.0
    %312 = vmatpush1.xpose.msra.mxu0 0.0
    %313 = vmatprep.subr.mxu0 0.0
    %314 = vmatpush1.xpose.msra.mxu0 0.0
    %315 = vmatprep.subr.mxu0 0.0
    %316 = vmatpush1.xpose.msra.mxu0 0.0
    %317 = vmatprep.subr.mxu0 0.0
    %318 = vmatpush1.xpose.msra.mxu0 0.0
    %319 = vmatprep.subr.mxu0 0.0
    %320 = vmatpush1.xpose.msra.mxu0 0.0
    %321 = vmatprep.mubr.f32.mxu0 0.0
    %322 = vmatmul.mubr.f32.gmra.mrb[0].mxu0 %v252
    %v323 = vpop.f32.mrb[0].mxu0
    %v324 = vadd.f32 %v249, %v323
    %v325 = vpop.f32.mrb[0].mxu0
    %326 = vdwg.mxu0
    %vm327 = vcmask 64512
    %v328 = vsel %vm327, %v324, -inf
    %329 = vmax.xlane.f32.xlu0 %v328
    %v330 = vpop.xlane.xlu0 %329
    %v331 = vsub.f32 %v324, %v330
    %v332 = vmul.f32 %v331, 1.442695
    %v333 = vpow.pop %v332
    %v334 = vsel %vm327, %v333, 0.0
    %335 = vadd.xlane.f32.xlu0 %v334
    %v336 = vpop.xlane.xlu0 %335
    %v337 = vrcp.pop %v336
    %v338 = vmul.f32 %v333, %v337
    %v340 = vsel %vm327, %v338, 0
    %342 = vmatprep.subr.mxu0 0.0
    %343 = vmatpush1.msra.mxu0 %v64
    %344 = vmatprep.subr.mxu0 0.0
    %345 = vmatpush1.msra.mxu0 0.0
    %346 = vmatprep.subr.mxu0 0.0
    %347 = vmatpush1.msra.mxu0 0.0
    %348 = vmatprep.subr.mxu0 0.0
    %349 = vmatpush1.msra.mxu0 0.0
    %350 = vmatprep.subr.mxu0 0.0
    %351 = vmatpush1.msra.mxu0 0.0
    %352 = vmatprep.subr.mxu0 0.0
    %353 = vmatpush1.msra.mxu0 0.0
    %354 = vmatprep.subr.mxu0 0.0
    %355 = vmatpush1.msra.mxu0 0.0
    %356 = vmatprep.subr.mxu0 0.0
    %357 = vmatpush1.msra.mxu0 0.0
    %358 = vmatprep.subr.mxu0 0.0
    %359 = vmatpush1.msra.mxu0 0.0
    %360 = vmatprep.subr.mxu0 0.0
    %361 = vmatpush1.msra.mxu0 0.0
    %362 = vmatprep.subr.mxu0 0.0
    %363 = vmatpush1.msra.mxu0 0.0
    %364 = vmatprep.subr.mxu0 0.0
    %365 = vmatpush1.msra.mxu0 0.0
    %366 = vmatprep.subr.mxu0 0.0
    %367 = vmatpush1.msra.mxu0 0.0
    %368 = vmatprep.subr.mxu0 0.0
    %369 = vmatpush1.msra.mxu0 0.0
    %370 = vmatprep.subr.mxu0 0.0
    %371 = vmatpush1.msra.mxu0 0.0
    %372 = vmatprep.subr.mxu0 0.0
    %373 = vmatpush1.msra.mxu0 0.0
    %374 = vmatprep.subr.mxu0 0.0
    %375 = vmatpush1.msra.mxu0 0.0
    %376 = vmatprep.subr.mxu0 0.0
    %377 = vmatpush1.msra.mxu0 0.0
    %378 = vmatprep.subr.mxu0 0.0
    %379 = vmatpush1.msra.mxu0 0.0
    %380 = vmatprep.subr.mxu0 0.0
    %381 = vmatpush1.msra.mxu0 0.0
    %382 = vmatprep.subr.mxu0 0.0
    %383 = vmatpush1.msra.mxu0 0.0
    %384 = vmatprep.subr.mxu0 0.0
    %385 = vmatpush1.msra.mxu0 0.0
    %386 = vmatprep.subr.mxu0 0.0
    %387 = vmatpush1.msra.mxu0 0.0
    %388 = vmatprep.subr.mxu0 0.0
    %389 = vmatpush1.msra.mxu0 0.0
    %390 = vmatprep.subr.mxu0 0.0
    %391 = vmatpush1.msra.mxu0 0.0
    %392 = vmatprep.subr.mxu0 0.0
    %393 = vmatpush1.msra.mxu0 0.0
    %394 = vmatprep.subr.mxu0 0.0
    %395 = vmatpush1.msra.mxu0 0.0
    %396 = vmatprep.subr.mxu0 0.0
    %397 = vmatpush1.msra.mxu0 0.0
    %398 = vmatprep.subr.mxu0 0.0
    %399 = vmatpush1.msra.mxu0 0.0
    %400 = vmatprep.subr.mxu0 0.0
    %401 = vmatpush1.msra.mxu0 0.0
    %402 = vmatprep.subr.mxu0 0.0
    %403 = vmatpush1.msra.mxu0 0.0
    %404 = vmatprep.subr.mxu0 0.0
    %405 = vmatpush1.msra.mxu0 0.0
    %406 = vmatprep.mubr.f32.mxu0 0.0
    %407 = vmatmul.mubr.f32.gmra.mrb[0].mxu0 %v340
    %v408 = vpop.f32.mrb[0].mxu0
    %v409 = vadd.f32 0.0, %v408
    %v410 = vpop.f32.mrb[0].mxu0
    %411 = vdwg.mxu0
    %412 = vst.msk [vmem:[#allocation8] sm:$0xff] %vm77, %v409
    %s413 = scalar_lea.vmem %s2, 1
    %v414 = vld [vmem:[%s413] sm:$0x1]
    %v416 = vlaneseq
    %v417 = vshrl.u32 %v416, 7
    %v418 = vsub.s32 0, %v417
    %v419 = vrot.slane %v414, %v418
    %v422 = vsel %vm77, %v160, 0
    %v425 = vsel %vm77, %v243, 0
    %427 = vmatprep.subr.mxu0 0.0
    %428 = vmatpush1.xpose.msra.mxu0 %v425
    %429 = vmatprep.subr.mxu0 0.0
    %430 = vmatpush1.xpose.msra.mxu0 0.0
    %431 = vmatprep.subr.mxu0 0.0
    %432 = vmatpush1.xpose.msra.mxu0 0.0
    %433 = vmatprep.subr.mxu0 0.0
    %434 = vmatpush1.xpose.msra.mxu0 0.0
    %435 = vmatprep.subr.mxu0 0.0
    %436 = vmatpush1.xpose.msra.mxu0 0.0
    %437 = vmatprep.subr.mxu0 0.0
    %438 = vmatpush1.xpose.msra.mxu0 0.0
    %439 = vmatprep.subr.mxu0 0.0
    %440 = vmatpush1.xpose.msra.mxu0 0.0
    %441 = vmatprep.subr.mxu0 0.0
    %442 = vmatpush1.xpose.msra.mxu0 0.0
    %443 = vmatprep.subr.mxu0 0.0
    %444 = vmatpush1.xpose.msra.mxu0 0.0
    %445 = vmatprep.subr.mxu0 0.0
    %446 = vmatpush1.xpose.msra.mxu0 0.0
    %447 = vmatprep.subr.mxu0 0.0
    %448 = vmatpush1.xpose.msra.mxu0 0.0
    %449 = vmatprep.subr.mxu0 0.0
    %450 = vmatpush1.xpose.msra.mxu0 0.0
    %451 = vmatprep.subr.mxu0 0.0
    %452 = vmatpush1.xpose.msra.mxu0 0.0
    %453 = vmatprep.subr.mxu0 0.0
    %454 = vmatpush1.xpose.msra.mxu0 0.0
    %455 = vmatprep.subr.mxu0 0.0
    %456 = vmatpush1.xpose.msra.mxu0 0.0
    %457 = vmatprep.subr.mxu0 0.0
    %458 = vmatpush1.xpose.msra.mxu0 0.0
    %459 = vmatprep.subr.mxu0 0.0
    %460 = vmatpush1.xpose.msra.mxu0 0.0
    %461 = vmatprep.subr.mxu0 0.0
    %462 = vmatpush1.xpose.msra.mxu0 0.0
    %463 = vmatprep.subr.mxu0 0.0
    %464 = vmatpush1.xpose.msra.mxu0 0.0
    %465 = vmatprep.subr.mxu0 0.0
    %466 = vmatpush1.xpose.msra.mxu0 0.0
    %467 = vmatprep.subr.mxu0 0.0
    %468 = vmatpush1.xpose.msra.mxu0 0.0
    %469 = vmatprep.subr.mxu0 0.0
    %470 = vmatpush1.xpose.msra.mxu0 0.0
    %471 = vmatprep.subr.mxu0 0.0
    %472 = vmatpush1.xpose.msra.mxu0 0.0
    %473 = vmatprep.subr.mxu0 0.0
    %474 = vmatpush1.xpose.msra.mxu0 0.0
    %475 = vmatprep.subr.mxu0 0.0
    %476 = vmatpush1.xpose.msra.mxu0 0.0
    %477 = vmatprep.subr.mxu0 0.0
    %478 = vmatpush1.xpose.msra.mxu0 0.0
    %479 = vmatprep.subr.mxu0 0.0
    %480 = vmatpush1.xpose.msra.mxu0 0.0
    %481 = vmatprep.subr.mxu0 0.0
    %482 = vmatpush1.xpose.msra.mxu0 0.0
    %483 = vmatprep.subr.mxu0 0.0
    %484 = vmatpush1.xpose.msra.mxu0 0.0
    %485 = vmatprep.subr.mxu0 0.0
    %486 = vmatpush1.xpose.msra.mxu0 0.0
    %487 = vmatprep.subr.mxu0 0.0
    %488 = vmatpush1.xpose.msra.mxu0 0.0
    %489 = vmatprep.subr.mxu0 0.0
    %490 = vmatpush1.xpose.msra.mxu0 0.0
    %491 = vmatprep.mubr.f32.mxu0 0.0
    %492 = vmatmul.mubr.f32.gmra.mrb[0].mxu0 %v422
    %v493 = vpop.f32.mrb[0].mxu0
    %v494 = vadd.f32 %v419, %v493
    %v495 = vpop.f32.mrb[0].mxu0
    %496 = vdwg.mxu0
    %v497 = vsel %vm327, %v494, -inf
    %498 = vmax.xlane.f32.xlu0 %v497
    %v499 = vpop.xlane.xlu0 %498
    %v500 = vsub.f32 %v494, %v499
    %v501 = vmul.f32 %v500, 1.442695
    %v502 = vpow.pop %v501
    %v503 = vsel %vm327, %v502, 0.0
    %504 = vadd.xlane.f32.xlu0 %v503
    %v505 = vpop.xlane.xlu0 %504
    %v506 = vrcp.pop %v505
    %v507 = vmul.f32 %v502, %v506
    %v509 = vsel %vm327, %v507, 0
    %511 = vmatprep.subr.mxu0 0.0
    %512 = vmatpush1.msra.mxu0 %v65
    %513 = vmatprep.subr.mxu0 0.0
    %514 = vmatpush1.msra.mxu0 0.0
    %515 = vmatprep.subr.mxu0 0.0
    %516 = vmatpush1.msra.mxu0 0.0
    %517 = vmatprep.subr.mxu0 0.0
    %518 = vmatpush1.msra.mxu0 0.0
    %519 = vmatprep.subr.mxu0 0.0
    %520 = vmatpush1.msra.mxu0 0.0
    %521 = vmatprep.subr.mxu0 0.0
    %522 = vmatpush1.msra.mxu0 0.0
    %523 = vmatprep.subr.mxu0 0.0
    %524 = vmatpush1.msra.mxu0 0.0
    %525 = vmatprep.subr.mxu0 0.0
    %526 = vmatpush1.msra.mxu0 0.0
    %527 = vmatprep.subr.mxu0 0.0
    %528 = vmatpush1.msra.mxu0 0.0
    %529 = vmatprep.subr.mxu0 0.0
    %530 = vmatpush1.msra.mxu0 0.0
    %531 = vmatprep.subr.mxu0 0.0
    %532 = vmatpush1.msra.mxu0 0.0
    %533 = vmatprep.subr.mxu0 0.0
    %534 = vmatpush1.msra.mxu0 0.0
    %535 = vmatprep.subr.mxu0 0.0
    %536 = vmatpush1.msra.mxu0 0.0
    %537 = vmatprep.subr.mxu0 0.0
    %538 = vmatpush1.msra.mxu0 0.0
    %539 = vmatprep.subr.mxu0 0.0
    %540 = vmatpush1.msra.mxu0 0.0
    %541 = vmatprep.subr.mxu0 0.0
    %542 = vmatpush1.msra.mxu0 0.0
    %543 = vmatprep.subr.mxu0 0.0
    %544 = vmatpush1.msra.mxu0 0.0
    %545 = vmatprep.subr.mxu0 0.0
    %546 = vmatpush1.msra.mxu0 0.0
    %547 = vmatprep.subr.mxu0 0.0
    %548 = vmatpush1.msra.mxu0 0.0
    %549 = vmatprep.subr.mxu0 0.0
    %550 = vmatpush1.msra.mxu0 0.0
    %551 = vmatprep.subr.mxu0 0.0
    %552 = vmatpush1.msra.mxu0 0.0
    %553 = vmatprep.subr.mxu0 0.0
    %554 = vmatpush1.msra.mxu0 0.0
    %555 = vmatprep.subr.mxu0 0.0
    %556 = vmatpush1.msra.mxu0 0.0
    %557 = vmatprep.subr.mxu0 0.0
    %558 = vmatpush1.msra.mxu0 0.0
    %559 = vmatprep.subr.mxu0 0.0
    %560 = vmatpush1.msra.mxu0 0.0
    %561 = vmatprep.subr.mxu0 0.0
    %562 = vmatpush1.msra.mxu0 0.0
    %563 = vmatprep.subr.mxu0 0.0
    %564 = vmatpush1.msra.mxu0 0.0
    %565 = vmatprep.subr.mxu0 0.0
    %566 = vmatpush1.msra.mxu0 0.0
    %567 = vmatprep.subr.mxu0 0.0
    %568 = vmatpush1.msra.mxu0 0.0
    %569 = vmatprep.subr.mxu0 0.0
    %570 = vmatpush1.msra.mxu0 0.0
    %571 = vmatprep.subr.mxu0 0.0
    %572 = vmatpush1.msra.mxu0 0.0
    %573 = vmatprep.subr.mxu0 0.0
    %574 = vmatpush1.msra.mxu0 0.0
    %575 = vmatprep.mubr.f32.mxu0 0.0
    %576 = vmatmul.mubr.f32.gmra.mrb[0].mxu0 %v509
    %v577 = vpop.f32.mrb[0].mxu0
    %v578 = vadd.f32 0.0, %v577
    %v579 = vpop.f32.mrb[0].mxu0
    %580 = vdwg.mxu0
    %581 = vst.msk [vmem:[#allocation8 + $0x8] sm:$0xff] %vm77, %v578
    // Predicated region
    $region34: #{tpu_custom_call.1} parent=1 // pred_check
      _
    $region35: #{tpu_custom_call.1} parent=1 // pred_check_branch
      %583 = sbr.rel (0) target = $region37
    $region36: #{tpu_custom_call.1} parent=1 // pred_region
      %s585 = ssub.s32 256, 256
      %586 = vsyncadd [#allocation4], %s585
      %s587 = sshll.u32 [#allocation8], 4
      %s588 = int_to_ptr.vmem [resolvable:$true] %s587
      %593 = dma.vmem_to_hbm [thread:$0]  %s588, 256, %s5, [#allocation4], 128, 128, 8
    $region37: #{tpu_custom_call.1} parent=1 // pred_fallthru
      _
    // Predicated region
    $region38: #{tpu_custom_call.1} parent=1 // pred_check
      _
    $region39: #{tpu_custom_call.1} parent=1 // pred_check_branch
      %595 = sbr.rel (0) target = $region41
    $region40: #{tpu_custom_call.1} parent=1 // pred_region
      %596 = dma.done [#allocation4], 256
    $region41: #{tpu_custom_call.1} parent=1 // pred_fallthru
      _
    %597 = vsyncpa [#allocation3], 1
    %598 = vsyncpa [#allocation6], 1
    %599 = vsyncpa [#allocation4], 1

</llo_original>
